<compile_context>
chip_gen: v6e
topology: v6e:2x2x1
jax: 0.10.0
libtpu: 0.0.40
codegen_flags: <defaults>
</compile_context>

<pallas_src>
import functools

import jax
import jax.numpy as jnp
from jax import lax
from jax.experimental import pallas as pl
from jax.experimental.pallas import tpu as pltpu

H1, H2, H3 = 32, 8, 1  # layer widths from the PyTorch module


def mlp_kernel(x_ref, w1_ref, b1_ref, w2_ref, b2_ref, w3_ref, b3_ref, o_ref):
    # x arrives in f32 straight from HBM; cast to bf16 for the MXU here
    # (VPU cast is free under the DMA on this mem-bound kernel).
    x = x_ref[...].astype(jnp.bfloat16)                          # (TILE_B, F)

    # h1^T = W1 (32,F) . x^T (F,TILE_B): NT contraction of the last dims
    h1 = lax.dot_general(w1_ref[...], x, (((1,), (1,)), ((), ())),
                         preferred_element_type=jnp.float32)     # (32, TILE_B) f32
    h1 = jnp.maximum(h1 + b1_ref[...], 0.0).astype(jnp.bfloat16)

    # h2^T = W2 (8,32) . h1^T (32,TILE_B)
    h2 = lax.dot_general(w2_ref[...], h1, (((1,), (0,)), ((), ())),
                         preferred_element_type=jnp.float32)     # (8, TILE_B) f32
    h2 = jnp.maximum(h2 + b2_ref[...], 0.0)

    # output layer (8 -> 1): weighted sublane reduction (VPU + XLU), lane-dense
    out = jnp.sum(w3_ref[...] * h2, axis=0, keepdims=True) + b3_ref[...]  # (1, TILE_B)
    o_ref[...] = out.astype(o_ref.dtype)


def _round_up(n, m):
    return (n + m - 1) // m * m


@functools.partial(jax.jit, static_argnames=("tile_b",))
def net_forward(x, params, tile_b=1024):
    """Fused MLP forward. x: (B, num_features) float32 -> (B, 1) float32."""
    w1, b1, w2, b2, w3, b3 = params
    B, F = x.shape

    # Batch tile: multiple of 128 (lane-dense output), capped by the request
    # and by the (rounded-up) batch itself.
    tb = min(_round_up(tile_b, 128), _round_up(B, 128))
    b_pad = _round_up(B, tb)
    n_tiles = b_pad // tb

    if b_pad != B:
        x = jnp.pad(x, ((0, b_pad - B), (0, 0)))

    def const(shape):
        # weights/biases: same block every grid step -> stay VMEM-resident
        return pl.BlockSpec(shape, lambda i: (0, 0))

    out = pl.pallas_call(
        mlp_kernel,
        grid=(n_tiles,),
        out_shape=jax.ShapeDtypeStruct((1, b_pad), jnp.float32),
        in_specs=[
            pl.BlockSpec((tb, F), lambda i: (i, 0)),   # x: pipelined batch tiles (f32)
            const((H1, F)),                            # w1 (32, F)   bf16
            const((H1, 1)),                            # b1 (32, 1)   f32
            const((H2, H1)),                           # w2 (8, 32)   bf16
            const((H2, 1)),                            # b2 (8, 1)    f32
            const((H2, H3)),                           # w3 (8, 1)    f32
            const((H3, 1)),                            # b3 (1, 1)    f32
        ],
        out_specs=pl.BlockSpec((1, tb), lambda i: (0, i)),
        compiler_params=pltpu.CompilerParams(
            dimension_semantics=("parallel",),
        ),
    )(x, w1, b1, w2, b2, w3, b3)

    return out.reshape(b_pad, 1)[:B]


def _linear_init(key, fan_in, fan_out):
    """torch.nn.Linear-style init: uniform +/- 1/sqrt(fan_in)."""
    kw, kb = jax.random.split(key)
    bound = 1.0 / jnp.sqrt(float(fan_in))
    w = jax.random.uniform(kw, (fan_out, fan_in), jnp.float32, -bound, bound)
    b = jax.random.uniform(kb, (fan_out, 1), jnp.float32, -bound, bound)
    return w, b


def init_params(key, num_features):
    k1, k2, k3 = jax.random.split(key, 3)
    w1, b1 = _linear_init(k1, num_features, H1)   # (32, F), (32, 1)
    w2, b2 = _linear_init(k2, H1, H2)             # (8, 32), (8, 1)
    w3, b3 = _linear_init(k3, H2, H3)             # (1, 8),  (1, 1)
    # Kernel layouts: fc1/fc2 weights (out, in) bf16 for the MXU;
    # output weight as an (8, 1) f32 column for the VPU/XLU reduction.
    return (w1.astype(jnp.bfloat16), b1,
            w2.astype(jnp.bfloat16), b2,
            w3.T.astype(jnp.float32), b3)


def reference_forward(x, params):
    """Plain-JAX reference mirroring the kernel's dtype chain."""
    w1, b1, w2, b2, w3, b3 = params
    xb = x.astype(jnp.bfloat16)
    h1 = jnp.maximum(
        jnp.dot(xb, w1.T, preferred_element_type=jnp.float32) + b1[:, 0], 0.0
    ).astype(jnp.bfloat16)
    h2 = jnp.maximum(
        jnp.dot(h1, w2.T, preferred_element_type=jnp.float32) + b2[:, 0], 0.0
    )
    return jnp.sum(h2 * w3[:, 0][None, :], axis=1, keepdims=True) + b3[:, 0]


if __name__ == "__main__":
    key = jax.random.PRNGKey(0)
    num_features = 13   # Boston-housing style tabular features
    batch = 300         # small; with tile_b=128 exercises 3 grid steps + padding

    kx, kp = jax.random.split(key)
    x = jax.random.normal(kx, (batch, num_features), dtype=jnp.float32)
    params = init_params(kp, num_features)

    out = jax.block_until_ready(net_forward(x, params, tile_b=128))
    ref = reference_forward(x, params)

    assert out.shape == (batch, 1), out.shape
    assert jnp.allclose(out, ref, atol=1e-2, rtol=1e-2), (
        "max abs err = %f" % float(jnp.max(jnp.abs(out - ref))))
    print("KERNEL_OK")
</pallas_src>

<mosaic_0001>
module attributes {stable_mosaic.version = 11 : i64} {
  func.func @mlp_kernel(%arg0: i32, %arg1: memref<128x13xf32, #tpu.memory_space<vmem>>, %arg2: memref<32x13xbf16, #tpu.memory_space<vmem>>, %arg3: memref<32x1xf32, #tpu.memory_space<vmem>>, %arg4: memref<8x32xbf16, #tpu.memory_space<vmem>>, %arg5: memref<8x1xf32, #tpu.memory_space<vmem>>, %arg6: memref<8x1xf32, #tpu.memory_space<vmem>>, %arg7: memref<1x1xf32, #tpu.memory_space<vmem>>, %arg8: memref<1x128xf32, #tpu.memory_space<vmem>>) attributes {dimension_semantics = [#tpu.dimension_semantics<parallel>], iteration_bounds = array<i64: 3>, scalar_prefetch = 0 : i64, scratch_operands = 0 : i64, tpu.core_type = #tpu.core_type<tc>, window_params = [{transform_indices = @transform_0, window_bounds = array<i64: 128, 13>}, {pipeline_mode = #tpu.pipeline_mode<synchronous>, transform_indices = @transform_1, window_bounds = array<i64: 32, 13>}, {pipeline_mode = #tpu.pipeline_mode<synchronous>, transform_indices = @transform_2, window_bounds = array<i64: 32, 1>}, {pipeline_mode = #tpu.pipeline_mode<synchronous>, transform_indices = @transform_3, window_bounds = array<i64: 8, 32>}, {pipeline_mode = #tpu.pipeline_mode<synchronous>, transform_indices = @transform_4, window_bounds = array<i64: 8, 1>}, {pipeline_mode = #tpu.pipeline_mode<synchronous>, transform_indices = @transform_5, window_bounds = array<i64: 8, 1>}, {pipeline_mode = #tpu.pipeline_mode<synchronous>, transform_indices = @transform_6, window_bounds = array<i64: 1, 1>}, {transform_indices = @transform_7, window_bounds = array<i64: 1, 128>}]} {
    %c0 = arith.constant 0 : index
    %c0_0 = arith.constant 0 : index
    %0 = vector.load %arg1[%c0, %c0_0] : memref<128x13xf32, #tpu.memory_space<vmem>>, vector<128x13xf32>
    %1 = arith.truncf %0 : vector<128x13xf32> to vector<128x13xbf16>
    %c0_1 = arith.constant 0 : index
    %c0_2 = arith.constant 0 : index
    %2 = vector.load %arg2[%c0_1, %c0_2] : memref<32x13xbf16, #tpu.memory_space<vmem>>, vector<32x13xbf16>
    %cst = arith.constant dense<0.000000e+00> : vector<32x128xf32>
    %3 = tpu.matmul %2, %1, %cst {dimension_numbers = #tpu.dot_dimension_numbers<[1], [1], [0], [0], [0, 0, 1, 0], [], []>} : vector<32x13xbf16>, vector<128x13xbf16>, vector<32x128xf32> -> vector<32x128xf32>
    %c0_3 = arith.constant 0 : index
    %c0_4 = arith.constant 0 : index
    %4 = vector.load %arg3[%c0_3, %c0_4] : memref<32x1xf32, #tpu.memory_space<vmem>>, vector<32x1xf32>
    %5 = vector.broadcast %4 : vector<32x1xf32> to vector<32x128xf32>
    %6 = arith.addf %3, %5 : vector<32x128xf32>
    %cst_5 = arith.constant 0.000000e+00 : f32
    %7 = vector.broadcast %cst_5 : f32 to vector<32x128xf32>
    %8 = arith.maximumf %6, %7 : vector<32x128xf32>
    %9 = arith.truncf %8 : vector<32x128xf32> to vector<32x128xbf16>
    %c0_6 = arith.constant 0 : index
    %c0_7 = arith.constant 0 : index
    %10 = vector.load %arg4[%c0_6, %c0_7] : memref<8x32xbf16, #tpu.memory_space<vmem>>, vector<8x32xbf16>
    %cst_8 = arith.constant dense<0.000000e+00> : vector<8x128xf32>
    %11 = tpu.matmul %10, %9, %cst_8 {dimension_numbers = #tpu.dot_dimension_numbers<[1], [0], [0], [1], [0, 0, 1, 1], [], []>} : vector<8x32xbf16>, vector<32x128xbf16>, vector<8x128xf32> -> vector<8x128xf32>
    %c0_9 = arith.constant 0 : index
    %c0_10 = arith.constant 0 : index
    %12 = vector.load %arg5[%c0_9, %c0_10] : memref<8x1xf32, #tpu.memory_space<vmem>>, vector<8x1xf32>
    %13 = vector.broadcast %12 : vector<8x1xf32> to vector<8x128xf32>
    %14 = arith.addf %11, %13 : vector<8x128xf32>
    %cst_11 = arith.constant 0.000000e+00 : f32
    %15 = vector.broadcast %cst_11 : f32 to vector<8x128xf32>
    %16 = arith.maximumf %14, %15 : vector<8x128xf32>
    %c0_12 = arith.constant 0 : index
    %c0_13 = arith.constant 0 : index
    %17 = vector.load %arg6[%c0_12, %c0_13] : memref<8x1xf32, #tpu.memory_space<vmem>>, vector<8x1xf32>
    %18 = vector.broadcast %17 : vector<8x1xf32> to vector<8x128xf32>
    %19 = arith.mulf %18, %16 : vector<8x128xf32>
    %cst_14 = arith.constant dense<0.000000e+00> : vector<128xf32>
    %20 = vector.multi_reduction <add>, %19, %cst_14 [0] : vector<8x128xf32> to vector<128xf32>
    %21 = vector.shape_cast %20 : vector<128xf32> to vector<1x128xf32>
    %c0_15 = arith.constant 0 : index
    %c0_16 = arith.constant 0 : index
    %22 = vector.load %arg7[%c0_15, %c0_16] : memref<1x1xf32, #tpu.memory_space<vmem>>, vector<1x1xf32>
    %23 = vector.broadcast %22 : vector<1x1xf32> to vector<1x128xf32>
    %24 = arith.addf %21, %23 : vector<1x128xf32>
    %c0_17 = arith.constant 0 : index
    %c0_18 = arith.constant 0 : index
    %25 = vector.load %arg8[%c0_17, %c0_18] : memref<1x128xf32, #tpu.memory_space<vmem>>, vector<1x128xf32>
    tpu.vector_store %arg8[%c0_17, %c0_18], %24 {strides = array<i32>} : memref<1x128xf32, #tpu.memory_space<vmem>>, vector<1x128xf32>,
    return
  }
  func.func @transform_0(%arg0: i32) -> (i32, i32) {
    %c0_i32 = arith.constant 0 : i32
    %c0_i32_0 = arith.constant 0 : i32
    return %arg0, %c0_i32 : i32, i32
  }
  func.func @transform_1(%arg0: i32) -> (i32, i32) {
    %c0_i32 = arith.constant 0 : i32
    %c0_i32_0 = arith.constant 0 : i32
    %c0_i32_1 = arith.constant 0 : i32
    return %c0_i32, %c0_i32_0 : i32, i32
  }
  func.func @transform_2(%arg0: i32) -> (i32, i32) {
    %c0_i32 = arith.constant 0 : i32
    %c0_i32_0 = arith.constant 0 : i32
    %c0_i32_1 = arith.constant 0 : i32
    return %c0_i32, %c0_i32_0 : i32, i32
  }
  func.func @transform_3(%arg0: i32) -> (i32, i32) {
    %c0_i32 = arith.constant 0 : i32
    %c0_i32_0 = arith.constant 0 : i32
    %c0_i32_1 = arith.constant 0 : i32
    return %c0_i32, %c0_i32_0 : i32, i32
  }
  func.func @transform_4(%arg0: i32) -> (i32, i32) {
    %c0_i32 = arith.constant 0 : i32
    %c0_i32_0 = arith.constant 0 : i32
    %c0_i32_1 = arith.constant 0 : i32
    return %c0_i32, %c0_i32_0 : i32, i32
  }
  func.func @transform_5(%arg0: i32) -> (i32, i32) {
    %c0_i32 = arith.constant 0 : i32
    %c0_i32_0 = arith.constant 0 : i32
    %c0_i32_1 = arith.constant 0 : i32
    return %c0_i32, %c0_i32_0 : i32, i32
  }
  func.func @transform_6(%arg0: i32) -> (i32, i32) {
    %c0_i32 = arith.constant 0 : i32
    %c0_i32_0 = arith.constant 0 : i32
    %c0_i32_1 = arith.constant 0 : i32
    return %c0_i32, %c0_i32_0 : i32, i32
  }
  func.func @transform_7(%arg0: i32) -> (i32, i32) {
    %c0_i32 = arith.constant 0 : i32
    %c0_i32_0 = arith.constant 0 : i32
    return %c0_i32, %arg0 : i32, i32
  }
}

</mosaic_0001>

<llo_original>
// kernel: net_forward.1
$region0: #{net_forward.1}
  #allocation0 [shape = 'u32[]', space=smem, size = 0x4, offset = 0x4, fixed_abs, tag = 'smem constant byte address 0x4 - core index']
  #allocation1 [shape = 'u32[144,128]{1,0:T(1,128)}', space=vmem, size = 0x12000, scoped, tag = 'internal scratch']
  #allocation2 [shape = 'f32[1,1]{1,0:T(1,128)S(1)}', space=vmem, size = 0x200, scoped, tag = 'scoped memory for net_forward.1']
  %s0 = inlined_call_operand.vmem [shape: f32[384,13], index: 0, kind: input, shape index: {}]
  %s1 = inlined_call_operand.vmem [shape: bf16[32,13], index: 1, kind: input, shape index: {}]
  %s2 = inlined_call_operand.vmem [shape: f32[32,1], index: 2, kind: input, shape index: {}]
  %s3 = inlined_call_operand.vmem [shape: bf16[8,32], index: 3, kind: input, shape index: {}]
  %s4 = inlined_call_operand.vmem [shape: f32[8,1], index: 4, kind: input, shape index: {}]
  %s5 = inlined_call_operand.vmem [shape: f32[8,1], index: 5, kind: input, shape index: {}]
  %s6 = inlined_call_operand.<no memory space> [shape: f32[1,1], index: 6, kind: input, shape index: {}]
  %s7 = inlined_call_operand.vmem [shape: f32[1,384], index: 7, kind: output, shape index: {}]
  %s8 = sld [smem:[#allocation0]]
  $region61: #{net_forward.1} parent=0
    _
  %s10 = ssub.s32 1, %s8
  %s11 = scalar_select 0, %s10, %s8
  %v12 = vstv %s6
  %13 = vst [vmem:[#allocation2] sm:$0x1] %v12
  loop: start=0, step=1, limit=5
  $region2: #{net_forward.1} parent=0 // loop_pre_header
    _
  $region3: #{net_forward.1} parent=0 // loop_header
    %s15 = sphi 0, %s19
    %p16 = scmp.ge.s32.totalorder %s15, 5
    %s25 = sphi 0, %s27
    %s28 = sphi 0, %s25
    %s29 = sphi 0, %s28
    %s45 = sphi 0, %s29
    %s49 = sphi 0, %s49
    %s51 = sphi 0, %s49
    %s52 = sphi 0, %s51
    %s66 = sphi 0, %s52
    %s70 = sphi 0, %s70
    %s72 = sphi 0, %s70
    %s73 = sphi 0, %s72
    %s87 = sphi 0, %s73
    %s91 = sphi 0, %s91
    %s93 = sphi 0, %s91
    %s94 = sphi 0, %s93
    %s108 = sphi 0, %s94
    %s112 = sphi 0, %s112
    %s114 = sphi 0, %s112
    %s115 = sphi 0, %s114
    %s129 = sphi 0, %s115
    %s133 = sphi 0, %s133
    %s135 = sphi 0, %s133
    %s136 = sphi 0, %s135
    %s150 = sphi 0, %s136
    %s154 = sphi 0, %s154
    %s156 = sphi 0, %s154
    %s157 = sphi 0, %s156
    %s171 = sphi 0, %s157
    %s177 = sphi 0, %s179
    %s180 = sphi 0, %s177
    %s181 = sphi 0, %s180
    %s197 = sphi 0, %s181
  $region4: #{net_forward.1} parent=0 // loop_header_branch
    %18 = sbr.rel (%p16) target = $region8
  $region5: #{net_forward.1} parent=0 // loop_body
    %s20 = ssub.s32 %s15, 1
    %s21 = ssub.s32 %s15, 2
    %s22 = sadd.s32 %s15, 1
    %s23 = ssub.s32 %s15, %s22
    %p24 = scmp.eq.s32.totalorder %s23, 0
    %s26 = sadd.s32 %s25, 1
    %s27 = scalar_select %p24, %s25, %s26
    %p30 = pneg %p24
    %p31 = scmp.eq.s32.totalorder %s15, 2
    %p32 = por %p30, %p31
    %p33 = scmp.ne.s32.totalorder %s25, %s28
    %p34 = scmp.eq.s32.totalorder %s15, 0
    %p35 = por %p33, %p34
    %p36 = scmp.ne.s32.totalorder %s25, %s28
    %p37 = scmp.eq.s32.totalorder %s20, 2
    %p38 = por %p36, %p37
    %p39 = scmp.ne.s32.totalorder %s28, %s29
    %p40 = scmp.eq.s32.totalorder %s20, 0
    %p41 = por %p39, %p40
    %p42 = scmp.ne.s32.totalorder %s28, %s29
    %p43 = scmp.eq.s32.totalorder %s21, 2
    %p44 = por %p42, %p43
    %p46 = scmp.ne.s32.totalorder %s29, %s45
    %p47 = scmp.eq.s32.totalorder %s21, 0
    %p48 = por %p46, %p47
    %s50 = sadd.s32 %s49, 1
    %p53 = scmp.eq.s32.totalorder %s15, 2
    %p54 = scmp.ne.s32.totalorder %s49, %s51
    %p55 = scmp.eq.s32.totalorder %s15, 0
    %p56 = por %p54, %p55
    %p57 = scmp.ne.s32.totalorder %s49, %s51
    %p58 = scmp.eq.s32.totalorder %s20, 2
    %p59 = por %p57, %p58
    %p60 = scmp.ne.s32.totalorder %s51, %s52
    %p61 = scmp.eq.s32.totalorder %s20, 0
    %p62 = por %p60, %p61
    %p63 = scmp.ne.s32.totalorder %s51, %s52
    %p64 = scmp.eq.s32.totalorder %s21, 2
    %p65 = por %p63, %p64
    %p67 = scmp.ne.s32.totalorder %s52, %s66
    %p68 = scmp.eq.s32.totalorder %s21, 0
    %p69 = por %p67, %p68
    %s71 = sadd.s32 %s70, 1
    %p74 = scmp.eq.s32.totalorder %s15, 2
    %p75 = scmp.ne.s32.totalorder %s70, %s72
    %p76 = scmp.eq.s32.totalorder %s15, 0
    %p77 = por %p75, %p76
    %p78 = scmp.ne.s32.totalorder %s70, %s72
    %p79 = scmp.eq.s32.totalorder %s20, 2
    %p80 = por %p78, %p79
    %p81 = scmp.ne.s32.totalorder %s72, %s73
    %p82 = scmp.eq.s32.totalorder %s20, 0
    %p83 = por %p81, %p82
    %p84 = scmp.ne.s32.totalorder %s72, %s73
    %p85 = scmp.eq.s32.totalorder %s21, 2
    %p86 = por %p84, %p85
    %p88 = scmp.ne.s32.totalorder %s73, %s87
    %p89 = scmp.eq.s32.totalorder %s21, 0
    %p90 = por %p88, %p89
    %s92 = sadd.s32 %s91, 1
    %p95 = scmp.eq.s32.totalorder %s15, 2
    %p96 = scmp.ne.s32.totalorder %s91, %s93
    %p97 = scmp.eq.s32.totalorder %s15, 0
    %p98 = por %p96, %p97
    %p99 = scmp.ne.s32.totalorder %s91, %s93
    %p100 = scmp.eq.s32.totalorder %s20, 2
    %p101 = por %p99, %p100
    %p102 = scmp.ne.s32.totalorder %s93, %s94
    %p103 = scmp.eq.s32.totalorder %s20, 0
    %p104 = por %p102, %p103
    %p105 = scmp.ne.s32.totalorder %s93, %s94
    %p106 = scmp.eq.s32.totalorder %s21, 2
    %p107 = por %p105, %p106
    %p109 = scmp.ne.s32.totalorder %s94, %s108
    %p110 = scmp.eq.s32.totalorder %s21, 0
    %p111 = por %p109, %p110
    %s113 = sadd.s32 %s112, 1
    %p116 = scmp.eq.s32.totalorder %s15, 2
    %p117 = scmp.ne.s32.totalorder %s112, %s114
    %p118 = scmp.eq.s32.totalorder %s15, 0
    %p119 = por %p117, %p118
    %p120 = scmp.ne.s32.totalorder %s112, %s114
    %p121 = scmp.eq.s32.totalorder %s20, 2
    %p122 = por %p120, %p121
    %p123 = scmp.ne.s32.totalorder %s114, %s115
    %p124 = scmp.eq.s32.totalorder %s20, 0
    %p125 = por %p123, %p124
    %p126 = scmp.ne.s32.totalorder %s114, %s115
    %p127 = scmp.eq.s32.totalorder %s21, 2
    %p128 = por %p126, %p127
    %p130 = scmp.ne.s32.totalorder %s115, %s129
    %p131 = scmp.eq.s32.totalorder %s21, 0
    %p132 = por %p130, %p131
    %s134 = sadd.s32 %s133, 1
    %p137 = scmp.eq.s32.totalorder %s15, 2
    %p138 = scmp.ne.s32.totalorder %s133, %s135
    %p139 = scmp.eq.s32.totalorder %s15, 0
    %p140 = por %p138, %p139
    %p141 = scmp.ne.s32.totalorder %s133, %s135
    %p142 = scmp.eq.s32.totalorder %s20, 2
    %p143 = por %p141, %p142
    %p144 = scmp.ne.s32.totalorder %s135, %s136
    %p145 = scmp.eq.s32.totalorder %s20, 0
    %p146 = por %p144, %p145
    %p147 = scmp.ne.s32.totalorder %s135, %s136
    %p148 = scmp.eq.s32.totalorder %s21, 2
    %p149 = por %p147, %p148
    %p151 = scmp.ne.s32.totalorder %s136, %s150
    %p152 = scmp.eq.s32.totalorder %s21, 0
    %p153 = por %p151, %p152
    %s155 = sadd.s32 %s154, 1
    %p158 = scmp.eq.s32.totalorder %s15, 2
    %p159 = scmp.ne.s32.totalorder %s154, %s156
    %p160 = scmp.eq.s32.totalorder %s15, 0
    %p161 = por %p159, %p160
    %p162 = scmp.ne.s32.totalorder %s154, %s156
    %p163 = scmp.eq.s32.totalorder %s20, 2
    %p164 = por %p162, %p163
    %p165 = scmp.ne.s32.totalorder %s156, %s157
    %p166 = scmp.eq.s32.totalorder %s20, 0
    %p167 = por %p165, %p166
    %p168 = scmp.ne.s32.totalorder %s156, %s157
    %p169 = scmp.eq.s32.totalorder %s21, 2
    %p170 = por %p168, %p169
    %p172 = scmp.ne.s32.totalorder %s157, %s171
    %p173 = scmp.eq.s32.totalorder %s21, 0
    %p174 = por %p172, %p173
    %s175 = ssub.s32 %s15, %s22
    %p176 = scmp.eq.s32.totalorder %s175, 0
    %s178 = sadd.s32 %s177, 1
    %s179 = scalar_select %p176, %s177, %s178
    %p182 = pneg %p176
    %p183 = scmp.eq.s32.totalorder %s15, 2
    %p184 = por %p182, %p183
    %p185 = scmp.ne.s32.totalorder %s177, %s180
    %p186 = scmp.eq.s32.totalorder %s15, 0
    %p187 = por %p185, %p186
    %p188 = scmp.ne.s32.totalorder %s177, %s180
    %p189 = scmp.eq.s32.totalorder %s20, 2
    %p190 = por %p188, %p189
    %p191 = scmp.ne.s32.totalorder %s180, %s181
    %p192 = scmp.eq.s32.totalorder %s20, 0
    %p193 = por %p191, %p192
    %p194 = scmp.ne.s32.totalorder %s180, %s181
    %p195 = scmp.eq.s32.totalorder %s21, 2
    %p196 = por %p194, %p195
    %p198 = scmp.ne.s32.totalorder %s181, %s197
    %p199 = scmp.eq.s32.totalorder %s21, 0
    %p200 = por %p198, %p199
    %p201 = scmp.le.s32.totalorder 1, %s15
    %p202 = scmp.lt.s32.totalorder %s15, 4
    %p203 = pnand %p201, %p202
    %p204 = pneg %p203
    // Predicated region
    $region9: #{net_forward.1} parent=5 // pred_check
      _
    $region10: #{net_forward.1} parent=5 // pred_check_branch
      %206 = sbr.rel (%p203) target = $region12
    $region11: #{net_forward.1} parent=5 // pred_region
      %s207 = ssub.s32 %s15, 1
      // Predicated region
      $region13: #{net_forward.1} parent=11 // pred_check
        %p208 = pneg %p62
      $region14: #{net_forward.1} parent=11 // pred_check_branch
        %210 = sbr.rel (%p208) target = $region16
      $region15: #{net_forward.1} parent=11 // pred_region
        _
      $region16: #{net_forward.1} parent=11 // pred_fallthru
        _
      // Predicated region
      $region17: #{net_forward.1} parent=11 // pred_check
        %p211 = pneg %p83
      $region18: #{net_forward.1} parent=11 // pred_check_branch
        %213 = sbr.rel (%p211) target = $region20
      $region19: #{net_forward.1} parent=11 // pred_region
        _
      $region20: #{net_forward.1} parent=11 // pred_fallthru
        _
      // Predicated region
      $region21: #{net_forward.1} parent=11 // pred_check
        %p214 = pneg %p104
      $region22: #{net_forward.1} parent=11 // pred_check_branch
        %216 = sbr.rel (%p214) target = $region24
      $region23: #{net_forward.1} parent=11 // pred_region
        _
      $region24: #{net_forward.1} parent=11 // pred_fallthru
        _
      // Predicated region
      $region25: #{net_forward.1} parent=11 // pred_check
        %p217 = pneg %p125
      $region26: #{net_forward.1} parent=11 // pred_check_branch
        %219 = sbr.rel (%p217) target = $region28
      $region27: #{net_forward.1} parent=11 // pred_region
        _
      $region28: #{net_forward.1} parent=11 // pred_fallthru
        _
      // Predicated region
      $region29: #{net_forward.1} parent=11 // pred_check
        %p220 = pneg %p146
      $region30: #{net_forward.1} parent=11 // pred_check_branch
        %222 = sbr.rel (%p220) target = $region32
      $region31: #{net_forward.1} parent=11 // pred_region
        _
      $region32: #{net_forward.1} parent=11 // pred_fallthru
        _
      // Predicated region
      $region33: #{net_forward.1} parent=11 // pred_check
        %p223 = pneg %p167
      $region34: #{net_forward.1} parent=11 // pred_check_branch
        %225 = sbr.rel (%p223) target = $region36
      $region35: #{net_forward.1} parent=11 // pred_region
        _
      $region36: #{net_forward.1} parent=11 // pred_fallthru
        _
    $region12: #{net_forward.1} parent=5 // pred_fallthru
      _
    %p226 = scmp.lt.s32.totalorder %s15, 3
    // Predicated region
    $region37: #{net_forward.1} parent=5 // pred_check
      %p227 = pneg %p226
    $region38: #{net_forward.1} parent=5 // pred_check_branch
      %229 = sbr.rel (%p227) target = $region40
    $region39: #{net_forward.1} parent=5 // pred_region
      // Predicated region
      $region41: #{net_forward.1} parent=39 // pred_check
        %p230 = pneg %p35
      $region42: #{net_forward.1} parent=39 // pred_check_branch
        %232 = sbr.rel (%p230) target = $region44
      $region43: #{net_forward.1} parent=39 // pred_region
        %s233 = smul.u32 16, %s15
        %p234 = scmp.lt.s32.totalorder %s233, 47
        %s235 = scalar_select %p234, %s233, 47
        %s236 = smul.addr %s235, 8
        %s237 = scalar_lea.vmem %s0, %s236
        %s238 = smul.u32 16, %s15
      $region44: #{net_forward.1} parent=39 // pred_fallthru
        _
    $region40: #{net_forward.1} parent=5 // pred_fallthru
      _
    %p239 = scmp.le.s32.totalorder 1, %s15
    %p240 = scmp.lt.s32.totalorder %s15, 4
    %p241 = pnand %p239, %p240
    %p242 = pneg %p241
    // Predicated region
    $region45: #{net_forward.1} parent=5 // pred_check
      _
    $region46: #{net_forward.1} parent=5 // pred_check_branch
      %244 = sbr.rel (%p241) target = $region48
    $region47: #{net_forward.1} parent=5 // pred_region
      %s245 = ssub.s32 %s15, 1
      %s246 = smul.u32 16, %s20
      %p247 = scmp.lt.s32.totalorder %s246, 47
      %s248 = scalar_select %p247, %s246, 47
      %s249 = smul.addr %s248, 8
      %s250 = scalar_lea.vmem %s0, %s249
      %p251 = pneg %p41
      %p252 = pneg %p38
      %p253 = pneg %p62
      %p254 = pneg %p59
      %p255 = pneg %p83
      %p256 = pneg %p80
      %p257 = pneg %p104
      %p258 = pneg %p101
      %p259 = pneg %p125
      %p260 = pneg %p122
      %p261 = pneg %p146
      %p262 = pneg %p143
      %p263 = pneg %p167
      %p264 = pneg %p164
      %p265 = pneg %p193
      %p266 = pneg %p190
      %p267 = scmp.lt.s32.totalorder %s20, 2
      %s268 = scalar_select %p267, %s20, 2
      %s269 = scalar_lea.vmem %s7, %s268
      %s270 = smul.u32 16, %s20
      %p271 = scmp.lt.s32.totalorder %s270, 47
      %s272 = scalar_select %p271, %s270, 47
      %s273 = smul.addr %s272, 8
      %s274 = scalar_lea.vmem %s0, %s273
      %s275 = smul.u32 16, %s20
      %p276 = scmp.lt.s32.totalorder %s20, 2
      %s277 = scalar_select %p276, %s20, 2
      %s278 = scalar_lea.vmem %s7, %s277
      %v280 = vld [vmem:[%s274] sm:$0xff]
      %v281 = vld [vmem:[%s274 + $0x8] sm:$0xff]
      %v282 = vld [vmem:[%s274 + $0x10] sm:$0xff]
      %v283 = vld [vmem:[%s274 + $0x18] sm:$0xff]
      %v284 = vld [vmem:[%s274 + $0x20] sm:$0xff]
      %v285 = vld [vmem:[%s274 + $0x28] sm:$0xff]
      %v286 = vld [vmem:[%s274 + $0x30] sm:$0xff]
      %v287 = vld [vmem:[%s274 + $0x38] sm:$0xff]
      %v288 = vld [vmem:[%s274 + $0x40] sm:$0xff]
      %v289 = vld [vmem:[%s274 + $0x48] sm:$0xff]
      %v290 = vld [vmem:[%s274 + $0x50] sm:$0xff]
      %v291 = vld [vmem:[%s274 + $0x58] sm:$0xff]
      %v292 = vld [vmem:[%s274 + $0x60] sm:$0xff]
      %v293 = vld [vmem:[%s274 + $0x68] sm:$0xff]
      %v294 = vld [vmem:[%s274 + $0x70] sm:$0xff]
      %v295 = vld [vmem:[%s274 + $0x78] sm:$0xff]
      %v296 = vpack.c.bf16 %v281, %v280
      %v297 = vpack.c.bf16 %v283, %v282
      %v298 = vpack.c.bf16 %v285, %v284
      %v299 = vpack.c.bf16 %v287, %v286
      %v300 = vpack.c.bf16 %v289, %v288
      %v301 = vpack.c.bf16 %v291, %v290
      %v302 = vpack.c.bf16 %v293, %v292
      %v303 = vpack.c.bf16 %v295, %v294
      %v304 = vld [vmem:[%s1] sm:$0xf]
      %v305 = vld [vmem:[%s1 + $0x4] sm:$0xf]
      %v306 = vld [vmem:[%s1 + $0x8] sm:$0xf]
      %v307 = vld [vmem:[%s1 + $0xc] sm:$0xf]
      %v308 = vld [vmem:[%s2] sm:$0xff]
      %v309 = vld [vmem:[%s2 + $0x8] sm:$0xff]
      %v310 = vld [vmem:[%s2 + $0x10] sm:$0xff]
      %v311 = vld [vmem:[%s2 + $0x18] sm:$0xff]
      %313 = vset.pattern.permute.xlu0 0
      %314 = vperm.xlu0 %313, %v308
      %v315 = vpop.permute.xlu0 %314
      %318 = vset.pattern.permute.xlu0 0
      %319 = vperm.xlu0 %318, %v309
      %v320 = vpop.permute.xlu0 %319
      %323 = vset.pattern.permute.xlu0 0
      %324 = vperm.xlu0 %323, %v310
      %v325 = vpop.permute.xlu0 %324
      %328 = vset.pattern.permute.xlu0 0
      %329 = vperm.xlu0 %328, %v311
      %v330 = vpop.permute.xlu0 %329
      %v336 = vunpack.c.l.b16 %v304
      %v337 = vunpack.c.l.b16 %v305
      %v338 = vunpack.c.l.b16 %v306
      %v339 = vunpack.c.l.b16 %v307
      %v340 = vpack.c.b16 %v337, %v336
      %v341 = vpack.c.b16 %v339, %v338
      %vm342 = vcmask 105472
      %v344 = vsel %vm342, %v340, 0
      %v347 = vsel %vm342, %v341, 0
      %v350 = vsel %vm342, %v296, 0
      %v353 = vsel %vm342, %v297, 0
      %v356 = vsel %vm342, %v298, 0
      %v359 = vsel %vm342, %v299, 0
      %v362 = vsel %vm342, %v300, 0
      %v365 = vsel %vm342, %v301, 0
      %v368 = vsel %vm342, %v302, 0
      %v371 = vsel %vm342, %v303, 0
      %373 = vmatprep.subr.bf16.mxu0 0
      %374 = vmatpush1.bf16.xpose.msra.mxu0 %v371
      %375 = vmatprep.subr.bf16.mxu0 0
      %376 = vmatpush1.bf16.xpose.msra.mxu0 %v368
      %377 = vmatprep.subr.bf16.mxu0 0
      %378 = vmatpush1.bf16.xpose.msra.mxu0 %v365
      %379 = vmatprep.subr.bf16.mxu0 0
      %380 = vmatpush1.bf16.xpose.msra.mxu0 %v362
      %381 = vmatprep.subr.bf16.mxu0 0
      %382 = vmatpush1.bf16.xpose.msra.mxu0 %v359
      %383 = vmatprep.subr.bf16.mxu0 0
      %384 = vmatpush1.bf16.xpose.msra.mxu0 %v356
      %385 = vmatprep.subr.bf16.mxu0 0
      %386 = vmatpush1.bf16.xpose.msra.mxu0 %v353
      %387 = vmatprep.subr.bf16.mxu0 0
      %388 = vmatpush1.bf16.xpose.msra.mxu0 %v350
      %389 = vmatprep.subr.bf16.mxu0 0
      %390 = vmatpush2.bf16.xpose.msra.mxu0 0
      %391 = vmatprep.subr.bf16.mxu0 0
      %392 = vmatpush2.bf16.xpose.msra.mxu0 0
      %393 = vmatprep.subr.bf16.mxu0 0
      %394 = vmatpush2.bf16.xpose.msra.mxu0 0
      %395 = vmatprep.subr.bf16.mxu0 0
      %396 = vmatpush2.bf16.xpose.msra.mxu0 0
      %397 = vmatprep.subr.bf16.mxu0 0
      %398 = vmatpush2.bf16.xpose.msra.mxu0 0
      %399 = vmatprep.subr.bf16.mxu0 0
      %400 = vmatpush2.bf16.xpose.msra.mxu0 0
      %401 = vmatprep.subr.bf16.mxu0 0
      %402 = vmatpush2.bf16.xpose.msra.mxu0 0
      %403 = vmatprep.subr.bf16.mxu0 0
      %404 = vmatpush2.bf16.xpose.msra.mxu0 0
      %405 = vmatprep.mubr.bf16.mxu0 0
      %406 = vmatmul.mubr.bf16.gmra.mxu0 %v344
      %v407 = vpop.f32.mrf.mxu0
      %v408 = vadd.f32 %v315, %v407
      %v409 = vpop.f32.mrf.mxu0
      %v410 = vpop.f32.mrf.mxu0
      %v411 = vadd.f32 %v320, %v410
      %v412 = vpop.f32.mrf.mxu0
      %413 = vmatprep.mubr.bf16.mxu0 0
      %414 = vmatmul.mubr.bf16.gmra.mxu0 %v347
      %v415 = vpop.f32.mrf.mxu0
      %v416 = vadd.f32 %v325, %v415
      %v417 = vpop.f32.mrf.mxu0
      %v418 = vpop.f32.mrf.mxu0
      %v419 = vadd.f32 %v330, %v418
      %v420 = vpop.f32.mrf.mxu0
      %421 = vdwg.mxu0
      %v422 = vmax.f32 %v408, 0.0
      %v423 = vmax.f32 %v411, 0.0
      %v424 = vmax.f32 %v416, 0.0
      %v425 = vmax.f32 %v419, 0.0
      %v426 = vpack.c.bf16 %v423, %v422
      %v427 = vpack.c.bf16 %v425, %v424
      %v428 = vld [vmem:[%s3] sm:$0xf]
      %v429 = vld [vmem:[%s4] sm:$0xff]
      %431 = vset.pattern.permute.xlu0 0
      %432 = vperm.xlu0 %431, %v429
      %v433 = vpop.permute.xlu0 %432
      %vm435 = vcmask 261120
      %v437 = vsel %vm435, %v428, 0
      %439 = vmatprep.subr.bf16.mxu0 0
      %440 = vmatpush1.bf16.msra.mxu0 0
      %441 = vmatprep.subr.bf16.mxu0 0
      %442 = vmatpush1.bf16.msra.mxu0 0
      %443 = vmatprep.subr.bf16.mxu0 0
      %444 = vmatpush1.bf16.msra.mxu0 0
      %445 = vmatprep.subr.bf16.mxu0 0
      %446 = vmatpush1.bf16.msra.mxu0 0
      %447 = vmatprep.subr.bf16.mxu0 0
      %448 = vmatpush1.bf16.msra.mxu0 0
      %449 = vmatprep.subr.bf16.mxu0 0
      %450 = vmatpush1.bf16.msra.mxu0 0
      %451 = vmatprep.subr.bf16.mxu0 0
      %452 = vmatpush1.bf16.msra.mxu0 %v427
      %453 = vmatprep.subr.bf16.mxu0 0
      %454 = vmatpush1.bf16.msra.mxu0 %v426
      %455 = vmatprep.subr.bf16.mxu0 0
      %456 = vmatpush2.bf16.msra.mxu0 0
      %457 = vmatprep.subr.bf16.mxu0 0
      %458 = vmatpush2.bf16.msra.mxu0 0
      %459 = vmatprep.subr.bf16.mxu0 0
      %460 = vmatpush2.bf16.msra.mxu0 0
      %461 = vmatprep.subr.bf16.mxu0 0
      %462 = vmatpush2.bf16.msra.mxu0 0
      %463 = vmatprep.subr.bf16.mxu0 0
      %464 = vmatpush2.bf16.msra.mxu0 0
      %465 = vmatprep.subr.bf16.mxu0 0
      %466 = vmatpush2.bf16.msra.mxu0 0
      %467 = vmatprep.subr.bf16.mxu0 0
      %468 = vmatpush2.bf16.msra.mxu0 0
      %469 = vmatprep.subr.bf16.mxu0 0
      %470 = vmatpush2.bf16.msra.mxu0 0
      %471 = vmatprep.mubr.bf16.mxu0 0
      %472 = vmatmul.mubr.bf16.gmra.mxu0 %v437
      %v473 = vpop.f32.mrf.mxu0
      %v474 = vadd.f32 %v433, %v473
      %v475 = vpop.f32.mrf.mxu0
      %v476 = vpop.f32.mrf.mxu0
      %v477 = vpop.f32.mrf.mxu0
      %478 = vdwg.mxu0
      %v479 = vmax.f32 %v474, 0.0
      %v480 = vld [vmem:[%s5] sm:$0xff]
      %482 = vset.pattern.permute.xlu0 0
      %483 = vperm.xlu0 %482, %v480
      %v484 = vpop.permute.xlu0 %483
      %v486 = vmul.f32 %v484, %v479
      %v487 = vrot.slane %v486, 4
      %v488 = vadd.f32 %v486, %v487
      %v489 = vrot.slane %v488, 2
      %v490 = vadd.f32 %v488, %v489
      %v491 = vrot.slane %v490, 1
      %v492 = vadd.f32 %v490, %v491
      %v493 = vld [vmem:[#allocation2] sm:$0x1]
      %495 = vset.pattern.permute.xlu0 0
      %496 = vperm.xlu0 %495, %v493
      %v497 = vpop.permute.xlu0 %496
      %v499 = vlaneseq
      %v500 = vshrl.u32 %v499, 7
      %v501 = vsub.s32 0, %v500
      %v502 = vrot.slane %v497, %v501
      %v503 = vadd.f32 %v492, %v502
      %504 = vst [vmem:[%s278] sm:$0x1] %v503
      %p505 = scmp.lt.s32.totalorder %s20, 2
      %s506 = scalar_select %p505, %s20, 2
      %s507 = scalar_lea.vmem %s7, %s506
      // Predicated region
      $region49: #{net_forward.1} parent=47 // pred_check
        %p508 = pneg %p190
      $region50: #{net_forward.1} parent=47 // pred_check_branch
        %510 = sbr.rel (%p508) target = $region52
      $region51: #{net_forward.1} parent=47 // pred_region
        _
      $region52: #{net_forward.1} parent=47 // pred_fallthru
        _
    $region48: #{net_forward.1} parent=5 // pred_fallthru
      _
    %p511 = scmp.le.s32.totalorder 2, %s15
    // Predicated region
    $region53: #{net_forward.1} parent=5 // pred_check
      %p512 = pneg %p511
    $region54: #{net_forward.1} parent=5 // pred_check_branch
      %514 = sbr.rel (%p512) target = $region56
    $region55: #{net_forward.1} parent=5 // pred_region
      %s515 = ssub.s32 %s15, 2
      // Predicated region
      $region57: #{net_forward.1} parent=55 // pred_check
        %p516 = pneg %p196
      $region58: #{net_forward.1} parent=55 // pred_check_branch
        %518 = sbr.rel (%p516) target = $region60
      $region59: #{net_forward.1} parent=55 // pred_region
        %p519 = scmp.lt.s32.totalorder %s21, 2
        %s520 = scalar_select %p519, %s21, 2
        %s521 = scalar_lea.vmem %s7, %s520
      $region60: #{net_forward.1} parent=55 // pred_fallthru
        _
    $region56: #{net_forward.1} parent=5 // pred_fallthru
      _
  $region6: #{net_forward.1} parent=0 // loop_footer
    %s19 = sadd.s32 1, %s15
  $region7: #{net_forward.1} parent=0 // loop_footer_branch
    %14 = sbr.rel target = $region3
  $region8: #{net_forward.1} parent=0 // loop_exit
    _

</llo_original>
